<compile_context>
chip_gen: v7x
topology: tpu7x:2x2x1
jax: 0.10.0
libtpu: 0.0.40
codegen_flags: <defaults>
</compile_context>

<pallas_src>
import math
import jax
import jax.numpy as jnp
from jax.experimental import pallas as pl
from jax.experimental.pallas import tpu as pltpu


def _se_block_kernel(x_ref, w1_ref, b1_ref, w2_ref, b2_ref, o_ref):
    """Fused SE block on one (TB, C, HW) tile. Weights are pre-transposed to (in, out)
    and w1 already carries the 1/(H*W) mean-pool scale."""
    # Global pool (lane-axis reduce). NOTE: deliberately NOT binding `x = x_ref[...]`
    # once -- re-reading the ref below keeps the live range to a few vregs instead of
    # the whole 4 MiB tile (which would spill and collide with the store slot on v5e).
    y = jnp.sum(x_ref[...].astype(jnp.float32), axis=-1)                  # (TB, C)

    # Squeeze: Linear(C -> C//r) + ReLU (MXU + VPU), f32 accumulation.
    h = jnp.dot(y, w1_ref[...], preferred_element_type=jnp.float32) + b1_ref[...]
    h = jnp.maximum(h, 0.0)                                                # (TB, C//r)

    # Excite: Linear(C//r -> C) + Sigmoid (MXU + EUP), f32.
    s = jnp.dot(h, w2_ref[...], preferred_element_type=jnp.float32) + b2_ref[...]
    s = jax.nn.sigmoid(s)                                                  # (TB, C)

    # Channel-wise rescale; second ref read, lane-dense store over fused spatial dim.
    o_ref[...] = (x_ref[...].astype(jnp.float32) * s[:, :, None]).astype(o_ref.dtype)


def prepare_se_params(w1, b1, w2, b2, spatial_size):
    """One-time parameter prep (parameter-load time, NOT per forward):
       * transpose PyTorch (out, in) Linear weights to (in, out) for the MXU,
       * fold the 1/(H*W) mean-pool scale into w1 (kernel uses a plain sum),
       * keep biases 2-D for TPU layout."""
    w1_t = (jnp.transpose(w1).astype(jnp.float32)) / float(spatial_size)
    w2_t = jnp.transpose(w2).astype(jnp.float32)
    return (w1_t, b1.reshape(1, -1).astype(jnp.float32),
            w2_t, b2.reshape(1, -1).astype(jnp.float32))


def _vmem_capacity_bytes():
    try:
        return int(pltpu.get_tpu_info().vmem_capacity_bytes)
    except Exception:
        return 64 << 20  # conservative fallback (v7x per-TC VMEM)


def _choose_batch_tile(B, C, HW, itemsize, *, max_tile_bytes=4 << 20):
    """Generation-aware batch tile:
       * double-buffered input + output tiles (4 buffers) fit the per-core VMEM budget
         with headroom for weights/spill (v7x: 64 MiB vs 128 MiB on v5e/v6e),
       * individual x tiles stay in the ~1-4 MiB range (past the ~85% HBM roofline knee),
       * the grid keeps >=2 (ideally >=4) steps so the 'parallel' batch axis shards across
         v7x's two TensorCores and the DMA pipeline has something to overlap."""
    row_bytes = C * HW * itemsize
    budget = _vmem_capacity_bytes() * 3 // 4
    tb_vmem = max(1, budget // (4 * row_bytes))
    tb_roof = max(1, max_tile_bytes // row_bytes)
    min_steps = 1 if B == 1 else (2 if B < 4 else 4)
    tb_depth = max(1, pl.cdiv(B, min_steps))
    return max(1, min(B, tb_vmem, tb_roof, tb_depth))


def se_block_forward(x, params, *, batch_tile=None, donate_x=False):
    """x: (B, C, H, W), f32 or bf16; params from prepare_se_params().
    Output dtype == x.dtype; internal pool/FC/sigmoid run in f32."""
    w1_t, b1_2d, w2_t, b2_2d = params
    B, C, H, W = x.shape
    HW = H * W
    C_red = w1_t.shape[1]
    itemsize = jnp.dtype(x.dtype).itemsize

    # Free reshape in the wrapper: spatial fuses onto the lane dim (lane-dense when
    # H*W % 128 == 0, as in this demo).
    # TODO(synk): for 7x7 / 14x14 feature maps switch to a channels-last (TB, HW, C)
    # block to avoid masked vst.msk stores and the two XLU relayouts around the FC stage
    # (only worth it if the surrounding network is channels-last).
    x3 = x.reshape(B, C, HW)

    TB = batch_tile if batch_tile is not None else _choose_batch_tile(B, C, HW, itemsize)
    TB = max(1, min(TB, B))
    grid = (pl.cdiv(B, TB),)
    # If B % TB != 0 the trailing partial block runs sigmoid on padded rows; the
    # out-of-range stores are dropped so results stay correct.

    tile_bytes = TB * C * HW * itemsize
    weight_bytes = (w1_t.size + w2_t.size + b1_2d.size + b2_2d.size) * 4
    vmem_need = 4 * tile_bytes + 2 * weight_bytes + (2 << 20)      # dbl-buffered in+out
    vmem_limit = int(min(_vmem_capacity_bytes(), max(vmem_need, 16 << 20)))

    flops = 2 * B * C * HW + 4 * B * C * C_red                     # pool + rescale + 2 matmuls
    bytes_accessed = 2 * x3.size * itemsize + weight_bytes

    out = pl.pallas_call(
        _se_block_kernel,
        out_shape=jax.ShapeDtypeStruct((B, C, HW), x.dtype),
        grid_spec=pltpu.PrefetchScalarGridSpec(
            num_scalar_prefetch=0,
            grid=grid,
            in_specs=[
                pl.BlockSpec((TB, C, HW), lambda i: (i, 0, 0)),    # x tile, double-buffered
                pl.BlockSpec((C, C_red), lambda i: (0, 0)),        # w1^T / HW, resident
                pl.BlockSpec((1, C_red), lambda i: (0, 0)),        # b1, resident
                pl.BlockSpec((C_red, C), lambda i: (0, 0)),        # w2^T, resident
                pl.BlockSpec((1, C), lambda i: (0, 0)),            # b2, resident
            ],
            out_specs=pl.BlockSpec((TB, C, HW), lambda i: (i, 0, 0)),
        ),
        compiler_params=pltpu.CompilerParams(
            dimension_semantics=("parallel",),                      # shard batch over TCs
            vmem_limit_bytes=vmem_limit),
        cost_estimate=pl.CostEstimate(
            flops=flops, transcendentals=B * C, bytes_accessed=bytes_accessed),
        input_output_aliases={0: 0} if donate_x else {},
    )(x3, w1_t, b1_2d, w2_t, b2_2d)

    return out.reshape(B, C, H, W)


def reference_forward(x, w1, b1, w2, b2):
    # Pure-JAX reference matching PyTorch SE_Block semantics.
    y = jnp.mean(x, axis=(2, 3))
    h = jnp.maximum(y @ w1.T + b1, 0.0)
    s = jax.nn.sigmoid(h @ w2.T + b2)
    return x * s[:, :, None, None]


if __name__ == "__main__":
    # Small shapes consistent with SE_Block(in_channels=128, reduction=16):
    #   B=2, C=128, H=W=16 -> hidden = 8, fused spatial = 256 (lane-dense).
    B, C, H, W = 2, 128, 16, 16
    reduction = 16
    C_red = C // reduction

    key = jax.random.PRNGKey(0)
    kx, kw1, kb1, kw2, kb2 = jax.random.split(key, 5)

    x = jax.random.normal(kx, (B, C, H, W), dtype=jnp.float32)

    # nn.Linear-style uniform(-1/sqrt(fan_in), 1/sqrt(fan_in)) init, PyTorch (out, in) layout.
    bound1 = 1.0 / math.sqrt(C)
    w1 = jax.random.uniform(kw1, (C_red, C), minval=-bound1, maxval=bound1, dtype=jnp.float32)
    b1 = jax.random.uniform(kb1, (C_red,), minval=-bound1, maxval=bound1, dtype=jnp.float32)
    bound2 = 1.0 / math.sqrt(C_red)
    w2 = jax.random.uniform(kw2, (C, C_red), minval=-bound2, maxval=bound2, dtype=jnp.float32)
    b2 = jax.random.uniform(kb2, (C,), minval=-bound2, maxval=bound2, dtype=jnp.float32)

    params = prepare_se_params(w1, b1, w2, b2, spatial_size=H * W)  # one-time prep

    # f32 path (tight tolerance vs reference).
    out = jax.block_until_ready(se_block_forward(x, params))
    ref = reference_forward(x, w1, b1, w2, b2)
    assert out.shape == (B, C, H, W)
    assert jnp.allclose(out, ref, atol=1e-5, rtol=1e-5), "f32 mismatch vs reference"

    # bf16 activations path (halves the dominant HBM stream; FC/sigmoid still f32).
    x_bf16 = x.astype(jnp.bfloat16)
    out_bf16 = jax.block_until_ready(se_block_forward(x_bf16, params))
    ref_bf16 = reference_forward(x_bf16.astype(jnp.float32), w1, b1, w2, b2)
    assert out_bf16.shape == (B, C, H, W)
    assert jnp.allclose(out_bf16.astype(jnp.float32), ref_bf16, atol=3e-2, rtol=3e-2), \
        "bf16 mismatch vs reference"

    print("KERNEL_OK")
</pallas_src>

<mosaic_0001>
module attributes {stable_mosaic.version = 11 : i64} {
  func.func @_se_block_kernel(%arg0: i32, %arg1: memref<1x128x256xf32, #tpu.memory_space<vmem>>, %arg2: memref<128x8xf32, #tpu.memory_space<vmem>>, %arg3: memref<1x8xf32, #tpu.memory_space<vmem>>, %arg4: memref<8x128xf32, #tpu.memory_space<vmem>>, %arg5: memref<1x128xf32, #tpu.memory_space<vmem>>, %arg6: memref<1x128x256xf32, #tpu.memory_space<vmem>>) attributes {dimension_semantics = [#tpu.dimension_semantics<parallel>], iteration_bounds = array<i64: 2>, scalar_prefetch = 0 : i64, scratch_operands = 0 : i64, tpu.core_type = #tpu.core_type<tc>, window_params = [{transform_indices = @transform_0, window_bounds = array<i64: 1, 128, 256>}, {pipeline_mode = #tpu.pipeline_mode<synchronous>, transform_indices = @transform_1, window_bounds = array<i64: 128, 8>}, {pipeline_mode = #tpu.pipeline_mode<synchronous>, transform_indices = @transform_2, window_bounds = array<i64: 1, 8>}, {pipeline_mode = #tpu.pipeline_mode<synchronous>, transform_indices = @transform_3, window_bounds = array<i64: 8, 128>}, {pipeline_mode = #tpu.pipeline_mode<synchronous>, transform_indices = @transform_4, window_bounds = array<i64: 1, 128>}, {transform_indices = @transform_5, window_bounds = array<i64: 1, 128, 256>}]} {
    %c0 = arith.constant 0 : index
    %c0_0 = arith.constant 0 : index
    %c0_1 = arith.constant 0 : index
    %0 = vector.load %arg1[%c0, %c0_0, %c0_1] : memref<1x128x256xf32, #tpu.memory_space<vmem>>, vector<1x128x256xf32>
    %cst = arith.constant dense<0.000000e+00> : vector<1x128xf32>
    %1 = vector.multi_reduction <add>, %0, %cst [2] : vector<1x128x256xf32> to vector<1x128xf32>
    %c0_2 = arith.constant 0 : index
    %c0_3 = arith.constant 0 : index
    %2 = vector.load %arg2[%c0_2, %c0_3] : memref<128x8xf32, #tpu.memory_space<vmem>>, vector<128x8xf32>
    %cst_4 = arith.constant dense<0.000000e+00> : vector<1x8xf32>
    %3 = tpu.matmul %1, %2, %cst_4 {dimension_numbers = #tpu.dot_dimension_numbers<[1], [0], [0], [1], [0, 0, 1, 1], [], []>} : vector<1x128xf32>, vector<128x8xf32>, vector<1x8xf32> -> vector<1x8xf32>
    %c0_5 = arith.constant 0 : index
    %c0_6 = arith.constant 0 : index
    %4 = vector.load %arg3[%c0_5, %c0_6] : memref<1x8xf32, #tpu.memory_space<vmem>>, vector<1x8xf32>
    %5 = arith.addf %3, %4 : vector<1x8xf32>
    %cst_7 = arith.constant 0.000000e+00 : f32
    %6 = vector.broadcast %cst_7 : f32 to vector<1x8xf32>
    %7 = arith.maximumf %5, %6 : vector<1x8xf32>
    %c0_8 = arith.constant 0 : index
    %c0_9 = arith.constant 0 : index
    %8 = vector.load %arg4[%c0_8, %c0_9] : memref<8x128xf32, #tpu.memory_space<vmem>>, vector<8x128xf32>
    %cst_10 = arith.constant dense<0.000000e+00> : vector<1x128xf32>
    %9 = tpu.matmul %7, %8, %cst_10 {dimension_numbers = #tpu.dot_dimension_numbers<[1], [0], [0], [1], [0, 0, 1, 1], [], []>} : vector<1x8xf32>, vector<8x128xf32>, vector<1x128xf32> -> vector<1x128xf32>
    %c0_11 = arith.constant 0 : index
    %c0_12 = arith.constant 0 : index
    %10 = vector.load %arg5[%c0_11, %c0_12] : memref<1x128xf32, #tpu.memory_space<vmem>>, vector<1x128xf32>
    %11 = arith.addf %9, %10 : vector<1x128xf32>
    %12 = arith.negf %11 : vector<1x128xf32>
    %13 = math.exp %12 : vector<1x128xf32>
    %cst_13 = arith.constant 1.000000e+00 : f32
    %14 = vector.broadcast %cst_13 : f32 to vector<1x128xf32>
    %15 = arith.addf %14, %13 : vector<1x128xf32>
    %16 = arith.divf %14, %15 : vector<1x128xf32>
    %c0_14 = arith.constant 0 : index
    %c0_15 = arith.constant 0 : index
    %c0_16 = arith.constant 0 : index
    %17 = vector.load %arg1[%c0_14, %c0_15, %c0_16] : memref<1x128x256xf32, #tpu.memory_space<vmem>>, vector<1x128x256xf32>
    %18 = vector.shape_cast %16 : vector<1x128xf32> to vector<1x128x1xf32>
    %19 = vector.broadcast %18 : vector<1x128x1xf32> to vector<1x128x256xf32>
    %20 = arith.mulf %17, %19 : vector<1x128x256xf32>
    %c0_17 = arith.constant 0 : index
    %c0_18 = arith.constant 0 : index
    %c0_19 = arith.constant 0 : index
    %21 = vector.load %arg6[%c0_17, %c0_18, %c0_19] : memref<1x128x256xf32, #tpu.memory_space<vmem>>, vector<1x128x256xf32>
    tpu.vector_store %arg6[%c0_17, %c0_18, %c0_19], %20 {strides = array<i32>} : memref<1x128x256xf32, #tpu.memory_space<vmem>>, vector<1x128x256xf32>,
    return
  }
  func.func @transform_0(%arg0: i32) -> (i32, i32, i32) {
    %c0_i32 = arith.constant 0 : i32
    %c0_i32_0 = arith.constant 0 : i32
    %c0_i32_1 = arith.constant 0 : i32
    return %arg0, %c0_i32, %c0_i32_0 : i32, i32, i32
  }
  func.func @transform_1(%arg0: i32) -> (i32, i32) {
    %c0_i32 = arith.constant 0 : i32
    %c0_i32_0 = arith.constant 0 : i32
    %c0_i32_1 = arith.constant 0 : i32
    return %c0_i32, %c0_i32_0 : i32, i32
  }
  func.func @transform_2(%arg0: i32) -> (i32, i32) {
    %c0_i32 = arith.constant 0 : i32
    %c0_i32_0 = arith.constant 0 : i32
    %c0_i32_1 = arith.constant 0 : i32
    return %c0_i32, %c0_i32_0 : i32, i32
  }
  func.func @transform_3(%arg0: i32) -> (i32, i32) {
    %c0_i32 = arith.constant 0 : i32
    %c0_i32_0 = arith.constant 0 : i32
    %c0_i32_1 = arith.constant 0 : i32
    return %c0_i32, %c0_i32_0 : i32, i32
  }
  func.func @transform_4(%arg0: i32) -> (i32, i32) {
    %c0_i32 = arith.constant 0 : i32
    %c0_i32_0 = arith.constant 0 : i32
    %c0_i32_1 = arith.constant 0 : i32
    return %c0_i32, %c0_i32_0 : i32, i32
  }
  func.func @transform_5(%arg0: i32) -> (i32, i32, i32) {
    %c0_i32 = arith.constant 0 : i32
    %c0_i32_0 = arith.constant 0 : i32
    %c0_i32_1 = arith.constant 0 : i32
    return %arg0, %c0_i32, %c0_i32_0 : i32, i32, i32
  }
}

</mosaic_0001>

<llo_original>
// kernel: tpu_custom_call.1
$region0: #{tpu_custom_call.1}
  #allocation0 [shape = 'u32[]', space=smem, size = 0x4, offset = 0x4, fixed_abs, tag = 'smem constant byte address 0x4 - core index']
  #allocation1 [shape = 'u32[144,128]{1,0:T(1,128)}', space=vmem, size = 0x12000, scoped, tag = 'internal scratch']
  %s0 = inlined_call_operand.hbm [shape: f32[2,128,256], index: 0, kind: input, shape index: {}]
  %s1 = inlined_call_operand.vmem [shape: f32[128,8], index: 1, kind: input, shape index: {}]
  %s2 = inlined_call_operand.vmem [shape: f32[1,8], index: 2, kind: input, shape index: {}]
  %s3 = inlined_call_operand.vmem [shape: f32[8,128], index: 3, kind: input, shape index: {}]
  %s4 = inlined_call_operand.vmem [shape: f32[1,128], index: 4, kind: input, shape index: {}]
  %s5 = inlined_call_operand.hbm [shape: f32[2,128,256], index: 5, kind: output, shape index: {}]
  %s6 = sld [smem:[#allocation0]]
  $region57: #{tpu_custom_call.1} parent=0
    _
  %s8 = ssub.s32 1, %s6
  %s9 = scalar_select 0, %s8, %s6
  $region1: #{tpu_custom_call.1} parent=0
    #allocation2 [shape = 'u8[262144]{0}', space=vmem, size = 0x40000, scoped, tag = 'input window, operand 0']
    #allocation3 [shape = 's32[2]{0}', space=sflag, size = 0x8, scoped, tag = 'scoped memory for tpu_custom_call.1']
    #allocation4 [shape = 's32[2]{0}', space=sflag, size = 0x8, scoped, tag = 'scoped memory for tpu_custom_call.1']
    #allocation5 [shape = 'u8[262144]{0}', space=vmem, size = 0x40000, scoped, tag = 'output window, operand 0']
    %10 = vsyncpa [#allocation3], 0
    %s11 = scalar_lea.sflag [#allocation3], 1
    %12 = vsyncpa %s11, 0
    %13 = vsyncpa [#allocation4], 0
    %s14 = scalar_lea.sflag [#allocation4], 1
    %15 = vsyncpa %s14, 0
    loop: start=0, step=1, limit=4
    $region2: #{tpu_custom_call.1} parent=1 // loop_pre_header
      _
    $region3: #{tpu_custom_call.1} parent=1 // loop_header
      %s17 = sphi 0, %s21
      %p18 = scmp.ge.s32.totalorder %s17, 4
      %s27 = sphi 0, %s29
      %s30 = sphi 0, %s27
      %s31 = sphi 0, %s30
      %s47 = sphi 0, %s31
      %s51 = sphi 0, %s51
      %s53 = sphi 0, %s51
      %s54 = sphi 0, %s53
      %s68 = sphi 0, %s54
      %s72 = sphi 0, %s72
      %s74 = sphi 0, %s72
      %s75 = sphi 0, %s74
      %s89 = sphi 0, %s75
      %s93 = sphi 0, %s93
      %s95 = sphi 0, %s93
      %s96 = sphi 0, %s95
      %s110 = sphi 0, %s96
      %s114 = sphi 0, %s114
      %s116 = sphi 0, %s114
      %s117 = sphi 0, %s116
      %s131 = sphi 0, %s117
      %s137 = sphi 0, %s139
      %s140 = sphi 0, %s137
      %s141 = sphi 0, %s140
      %s157 = sphi 0, %s141
    $region4: #{tpu_custom_call.1} parent=1 // loop_header_branch
      %20 = sbr.rel (%p18) target = $region8
    $region5: #{tpu_custom_call.1} parent=1 // loop_body
      %s22 = ssub.s32 %s17, 1
      %s23 = ssub.s32 %s17, 2
      %s24 = sadd.s32 %s17, 1
      %s25 = ssub.s32 %s17, %s24
      %p26 = scmp.eq.s32.totalorder %s25, 0
      %s28 = sadd.s32 %s27, 1
      %s29 = scalar_select %p26, %s27, %s28
      %p32 = pneg %p26
      %p33 = scmp.eq.s32.totalorder %s17, 1
      %p34 = por %p32, %p33
      %p35 = scmp.ne.s32.totalorder %s27, %s30
      %p36 = scmp.eq.s32.totalorder %s17, 0
      %p37 = por %p35, %p36
      %p38 = scmp.ne.s32.totalorder %s27, %s30
      %p39 = scmp.eq.s32.totalorder %s22, 1
      %p40 = por %p38, %p39
      %p41 = scmp.ne.s32.totalorder %s30, %s31
      %p42 = scmp.eq.s32.totalorder %s22, 0
      %p43 = por %p41, %p42
      %p44 = scmp.ne.s32.totalorder %s30, %s31
      %p45 = scmp.eq.s32.totalorder %s23, 1
      %p46 = por %p44, %p45
      %p48 = scmp.ne.s32.totalorder %s31, %s47
      %p49 = scmp.eq.s32.totalorder %s23, 0
      %p50 = por %p48, %p49
      %s52 = sadd.s32 %s51, 1
      %p55 = scmp.eq.s32.totalorder %s17, 1
      %p56 = scmp.ne.s32.totalorder %s51, %s53
      %p57 = scmp.eq.s32.totalorder %s17, 0
      %p58 = por %p56, %p57
      %p59 = scmp.ne.s32.totalorder %s51, %s53
      %p60 = scmp.eq.s32.totalorder %s22, 1
      %p61 = por %p59, %p60
      %p62 = scmp.ne.s32.totalorder %s53, %s54
      %p63 = scmp.eq.s32.totalorder %s22, 0
      %p64 = por %p62, %p63
      %p65 = scmp.ne.s32.totalorder %s53, %s54
      %p66 = scmp.eq.s32.totalorder %s23, 1
      %p67 = por %p65, %p66
      %p69 = scmp.ne.s32.totalorder %s54, %s68
      %p70 = scmp.eq.s32.totalorder %s23, 0
      %p71 = por %p69, %p70
      %s73 = sadd.s32 %s72, 1
      %p76 = scmp.eq.s32.totalorder %s17, 1
      %p77 = scmp.ne.s32.totalorder %s72, %s74
      %p78 = scmp.eq.s32.totalorder %s17, 0
      %p79 = por %p77, %p78
      %p80 = scmp.ne.s32.totalorder %s72, %s74
      %p81 = scmp.eq.s32.totalorder %s22, 1
      %p82 = por %p80, %p81
      %p83 = scmp.ne.s32.totalorder %s74, %s75
      %p84 = scmp.eq.s32.totalorder %s22, 0
      %p85 = por %p83, %p84
      %p86 = scmp.ne.s32.totalorder %s74, %s75
      %p87 = scmp.eq.s32.totalorder %s23, 1
      %p88 = por %p86, %p87
      %p90 = scmp.ne.s32.totalorder %s75, %s89
      %p91 = scmp.eq.s32.totalorder %s23, 0
      %p92 = por %p90, %p91
      %s94 = sadd.s32 %s93, 1
      %p97 = scmp.eq.s32.totalorder %s17, 1
      %p98 = scmp.ne.s32.totalorder %s93, %s95
      %p99 = scmp.eq.s32.totalorder %s17, 0
      %p100 = por %p98, %p99
      %p101 = scmp.ne.s32.totalorder %s93, %s95
      %p102 = scmp.eq.s32.totalorder %s22, 1
      %p103 = por %p101, %p102
      %p104 = scmp.ne.s32.totalorder %s95, %s96
      %p105 = scmp.eq.s32.totalorder %s22, 0
      %p106 = por %p104, %p105
      %p107 = scmp.ne.s32.totalorder %s95, %s96
      %p108 = scmp.eq.s32.totalorder %s23, 1
      %p109 = por %p107, %p108
      %p111 = scmp.ne.s32.totalorder %s96, %s110
      %p112 = scmp.eq.s32.totalorder %s23, 0
      %p113 = por %p111, %p112
      %s115 = sadd.s32 %s114, 1
      %p118 = scmp.eq.s32.totalorder %s17, 1
      %p119 = scmp.ne.s32.totalorder %s114, %s116
      %p120 = scmp.eq.s32.totalorder %s17, 0
      %p121 = por %p119, %p120
      %p122 = scmp.ne.s32.totalorder %s114, %s116
      %p123 = scmp.eq.s32.totalorder %s22, 1
      %p124 = por %p122, %p123
      %p125 = scmp.ne.s32.totalorder %s116, %s117
      %p126 = scmp.eq.s32.totalorder %s22, 0
      %p127 = por %p125, %p126
      %p128 = scmp.ne.s32.totalorder %s116, %s117
      %p129 = scmp.eq.s32.totalorder %s23, 1
      %p130 = por %p128, %p129
      %p132 = scmp.ne.s32.totalorder %s117, %s131
      %p133 = scmp.eq.s32.totalorder %s23, 0
      %p134 = por %p132, %p133
      %s135 = ssub.s32 %s17, %s24
      %p136 = scmp.eq.s32.totalorder %s135, 0
      %s138 = sadd.s32 %s137, 1
      %s139 = scalar_select %p136, %s137, %s138
      %p142 = pneg %p136
      %p143 = scmp.eq.s32.totalorder %s17, 1
      %p144 = por %p142, %p143
      %p145 = scmp.ne.s32.totalorder %s137, %s140
      %p146 = scmp.eq.s32.totalorder %s17, 0
      %p147 = por %p145, %p146
      %p148 = scmp.ne.s32.totalorder %s137, %s140
      %p149 = scmp.eq.s32.totalorder %s22, 1
      %p150 = por %p148, %p149
      %p151 = scmp.ne.s32.totalorder %s140, %s141
      %p152 = scmp.eq.s32.totalorder %s22, 0
      %p153 = por %p151, %p152
      %p154 = scmp.ne.s32.totalorder %s140, %s141
      %p155 = scmp.eq.s32.totalorder %s23, 1
      %p156 = por %p154, %p155
      %p158 = scmp.ne.s32.totalorder %s141, %s157
      %p159 = scmp.eq.s32.totalorder %s23, 0
      %p160 = por %p158, %p159
      %p161 = scmp.le.s32.totalorder 1, %s17
      %p162 = scmp.lt.s32.totalorder %s17, 3
      %p163 = pnand %p161, %p162
      %p164 = pneg %p163
      // Predicated region
      $region9: #{tpu_custom_call.1} parent=5 // pred_check
        _
      $region10: #{tpu_custom_call.1} parent=5 // pred_check_branch
        %166 = sbr.rel (%p163) target = $region12
      $region11: #{tpu_custom_call.1} parent=5 // pred_region
        %s167 = ssub.s32 %s17, 1
        // Predicated region
        $region13: #{tpu_custom_call.1} parent=11 // pred_check
          %p168 = pneg %p64
        $region14: #{tpu_custom_call.1} parent=11 // pred_check_branch
          %170 = sbr.rel (%p168) target = $region16
        $region15: #{tpu_custom_call.1} parent=11 // pred_region
          _
        $region16: #{tpu_custom_call.1} parent=11 // pred_fallthru
          _
        // Predicated region
        $region17: #{tpu_custom_call.1} parent=11 // pred_check
          %p171 = pneg %p85
        $region18: #{tpu_custom_call.1} parent=11 // pred_check_branch
          %173 = sbr.rel (%p171) target = $region20
        $region19: #{tpu_custom_call.1} parent=11 // pred_region
          _
        $region20: #{tpu_custom_call.1} parent=11 // pred_fallthru
          _
        // Predicated region
        $region21: #{tpu_custom_call.1} parent=11 // pred_check
          %p174 = pneg %p106
        $region22: #{tpu_custom_call.1} parent=11 // pred_check_branch
          %176 = sbr.rel (%p174) target = $region24
        $region23: #{tpu_custom_call.1} parent=11 // pred_region
          _
        $region24: #{tpu_custom_call.1} parent=11 // pred_fallthru
          _
        // Predicated region
        $region25: #{tpu_custom_call.1} parent=11 // pred_check
          %p177 = pneg %p127
        $region26: #{tpu_custom_call.1} parent=11 // pred_check_branch
          %179 = sbr.rel (%p177) target = $region28
        $region27: #{tpu_custom_call.1} parent=11 // pred_region
          _
        $region28: #{tpu_custom_call.1} parent=11 // pred_fallthru
          _
      $region12: #{tpu_custom_call.1} parent=5 // pred_fallthru
        _
      %p180 = scmp.lt.s32.totalorder %s17, 2
      // Predicated region
      $region29: #{tpu_custom_call.1} parent=5 // pred_check
        %p181 = pneg %p180
      $region30: #{tpu_custom_call.1} parent=5 // pred_check_branch
        %183 = sbr.rel (%p181) target = $region32
      $region31: #{tpu_custom_call.1} parent=5 // pred_region
        // Predicated region
        $region33: #{tpu_custom_call.1} parent=31 // pred_check
          %p184 = pneg %p37
        $region34: #{tpu_custom_call.1} parent=31 // pred_check_branch
          %186 = sbr.rel (%p184) target = $region36
        $region35: #{tpu_custom_call.1} parent=31 // pred_region
          %s187 = sand.u32 %s27, 1
          %s188 = scalar_lea.sflag [#allocation3], %s187
          %s189 = sand.u32 %s27, 1
          %s190 = smul.addr %s189, 256
          %s191 = scalar_lea.vmem [#allocation2], %s190
          %s193 = ssub.s32 4096, 4096
          %194 = vsyncadd %s188, %s193
          %s195 = smul.addr %s17, 32
          %s196 = smul.addr %s195, 128
          %s197 = scalar_lea.hbm %s0, %s196
          %s198 = sshll.u32 %s191, 4
          %s199 = int_to_ptr.vmem [resolvable:$true] %s198
          %204 = dma.hbm_to_vmem [thread:$0]  %s197, 4096, %s199, %s188, 256, 256, 16
        $region36: #{tpu_custom_call.1} parent=31 // pred_fallthru
          _
      $region32: #{tpu_custom_call.1} parent=5 // pred_fallthru
        _
      %p205 = scmp.le.s32.totalorder 1, %s17
      %p206 = scmp.lt.s32.totalorder %s17, 3
      %p207 = pnand %p205, %p206
      %p208 = pneg %p207
      // Predicated region
      $region37: #{tpu_custom_call.1} parent=5 // pred_check
        _
      $region38: #{tpu_custom_call.1} parent=5 // pred_check_branch
        %210 = sbr.rel (%p207) target = $region40
      $region39: #{tpu_custom_call.1} parent=5 // pred_region
        %s211 = ssub.s32 %s17, 1
        %s212 = sand.u32 %s30, 1
        %s213 = scalar_lea.sflag [#allocation3], %s212
        %s214 = sand.u32 %s30, 1
        %s215 = smul.addr %s214, 256
        %s216 = scalar_lea.vmem [#allocation2], %s215
        // Predicated region
        $region41: #{tpu_custom_call.1} parent=39 // pred_check
          %p217 = pneg %p43
        $region42: #{tpu_custom_call.1} parent=39 // pred_check_branch
          %219 = sbr.rel (%p217) target = $region44
        $region43: #{tpu_custom_call.1} parent=39 // pred_region
          %220 = dma.done %s213, 4096
        $region44: #{tpu_custom_call.1} parent=39 // pred_fallthru
          _
        %s221 = sand.u32 %s30, 1
        %s222 = scalar_lea.sflag [#allocation3], %s221
        %s223 = sand.u32 %s30, 1
        %s224 = smul.addr %s223, 256
        %s225 = scalar_lea.vmem [#allocation2], %s224
        %p226 = pneg %p43
        %p227 = pneg %p40
        %p228 = pneg %p64
        %p229 = pneg %p61
        %p230 = pneg %p85
        %p231 = pneg %p82
        %p232 = pneg %p106
        %p233 = pneg %p103
        %p234 = pneg %p127
        %p235 = pneg %p124
        %p236 = pneg %p153
        %p237 = pneg %p150
        %s238 = sand.u32 %s140, 1
        %s239 = scalar_lea.sflag [#allocation4], %s238
        %s240 = sand.u32 %s140, 1
        %s241 = smul.addr %s240, 256
        %s242 = scalar_lea.vmem [#allocation5], %s241
        %v243 = vld [vmem:[%s216] sm:$0xff]
        %v244 = vld [vmem:[%s216 + $0x8] sm:$0xff]
        %v245 = vld [vmem:[%s216 + $0x10] sm:$0xff]
        %v246 = vld [vmem:[%s216 + $0x18] sm:$0xff]
        %v247 = vld [vmem:[%s216 + $0x20] sm:$0xff]
        %v248 = vld [vmem:[%s216 + $0x28] sm:$0xff]
        %v249 = vld [vmem:[%s216 + $0x30] sm:$0xff]
        %v250 = vld [vmem:[%s216 + $0x38] sm:$0xff]
        %v251 = vld [vmem:[%s216 + $0x40] sm:$0xff]
        %v252 = vld [vmem:[%s216 + $0x48] sm:$0xff]
        %v253 = vld [vmem:[%s216 + $0x50] sm:$0xff]
        %v254 = vld [vmem:[%s216 + $0x58] sm:$0xff]
        %v255 = vld [vmem:[%s216 + $0x60] sm:$0xff]
        %v256 = vld [vmem:[%s216 + $0x68] sm:$0xff]
        %v257 = vld [vmem:[%s216 + $0x70] sm:$0xff]
        %v258 = vld [vmem:[%s216 + $0x78] sm:$0xff]
        %v259 = vld [vmem:[%s216 + $0x80] sm:$0xff]
        %v260 = vld [vmem:[%s216 + $0x88] sm:$0xff]
        %v261 = vld [vmem:[%s216 + $0x90] sm:$0xff]
        %v262 = vld [vmem:[%s216 + $0x98] sm:$0xff]
        %v263 = vld [vmem:[%s216 + $0xa0] sm:$0xff]
        %v264 = vld [vmem:[%s216 + $0xa8] sm:$0xff]
        %v265 = vld [vmem:[%s216 + $0xb0] sm:$0xff]
        %v266 = vld [vmem:[%s216 + $0xb8] sm:$0xff]
        %v267 = vld [vmem:[%s216 + $0xc0] sm:$0xff]
        %v268 = vld [vmem:[%s216 + $0xc8] sm:$0xff]
        %v269 = vld [vmem:[%s216 + $0xd0] sm:$0xff]
        %v270 = vld [vmem:[%s216 + $0xd8] sm:$0xff]
        %v271 = vld [vmem:[%s216 + $0xe0] sm:$0xff]
        %v272 = vld [vmem:[%s216 + $0xe8] sm:$0xff]
        %v273 = vld [vmem:[%s216 + $0xf0] sm:$0xff]
        %v274 = vld [vmem:[%s216 + $0xf8] sm:$0xff]
        %v275 = vadd.f32 %v243, %v244
        %276 = vadd.xlane.f32.xlu0 %v275
        %v277 = vpop.xlane.xlu0 %276
        %v278 = vadd.f32 %v245, %v246
        %279 = vadd.xlane.f32.xlu0 %v278
        %v280 = vpop.xlane.xlu0 %279
        %v281 = vadd.f32 %v247, %v248
        %282 = vadd.xlane.f32.xlu0 %v281
        %v283 = vpop.xlane.xlu0 %282
        %v284 = vadd.f32 %v249, %v250
        %285 = vadd.xlane.f32.xlu0 %v284
        %v286 = vpop.xlane.xlu0 %285
        %v287 = vadd.f32 %v251, %v252
        %288 = vadd.xlane.f32.xlu0 %v287
        %v289 = vpop.xlane.xlu0 %288
        %v290 = vadd.f32 %v253, %v254
        %291 = vadd.xlane.f32.xlu0 %v290
        %v292 = vpop.xlane.xlu0 %291
        %v293 = vadd.f32 %v255, %v256
        %294 = vadd.xlane.f32.xlu0 %v293
        %v295 = vpop.xlane.xlu0 %294
        %v296 = vadd.f32 %v257, %v258
        %297 = vadd.xlane.f32.xlu0 %v296
        %v298 = vpop.xlane.xlu0 %297
        %v299 = vadd.f32 %v259, %v260
        %300 = vadd.xlane.f32.xlu0 %v299
        %v301 = vpop.xlane.xlu0 %300
        %v302 = vadd.f32 %v261, %v262
        %303 = vadd.xlane.f32.xlu0 %v302
        %v304 = vpop.xlane.xlu0 %303
        %v305 = vadd.f32 %v263, %v264
        %306 = vadd.xlane.f32.xlu0 %v305
        %v307 = vpop.xlane.xlu0 %306
        %v308 = vadd.f32 %v265, %v266
        %309 = vadd.xlane.f32.xlu0 %v308
        %v310 = vpop.xlane.xlu0 %309
        %v311 = vadd.f32 %v267, %v268
        %312 = vadd.xlane.f32.xlu0 %v311
        %v313 = vpop.xlane.xlu0 %312
        %v314 = vadd.f32 %v269, %v270
        %315 = vadd.xlane.f32.xlu0 %v314
        %v316 = vpop.xlane.xlu0 %315
        %v317 = vadd.f32 %v271, %v272
        %318 = vadd.xlane.f32.xlu0 %v317
        %v319 = vpop.xlane.xlu0 %318
        %v320 = vadd.f32 %v273, %v274
        %321 = vadd.xlane.f32.xlu0 %v320
        %v322 = vpop.xlane.xlu0 %321
        %v323 = vld [vmem:[%s1] sm:$0xff]
        %v324 = vld [vmem:[%s1 + $0x8] sm:$0xff]
        %v325 = vld [vmem:[%s1 + $0x10] sm:$0xff]
        %v326 = vld [vmem:[%s1 + $0x18] sm:$0xff]
        %v327 = vld [vmem:[%s1 + $0x20] sm:$0xff]
        %v328 = vld [vmem:[%s1 + $0x28] sm:$0xff]
        %v329 = vld [vmem:[%s1 + $0x30] sm:$0xff]
        %v330 = vld [vmem:[%s1 + $0x38] sm:$0xff]
        %v331 = vld [vmem:[%s1 + $0x40] sm:$0xff]
        %v332 = vld [vmem:[%s1 + $0x48] sm:$0xff]
        %v333 = vld [vmem:[%s1 + $0x50] sm:$0xff]
        %v334 = vld [vmem:[%s1 + $0x58] sm:$0xff]
        %v335 = vld [vmem:[%s1 + $0x60] sm:$0xff]
        %v336 = vld [vmem:[%s1 + $0x68] sm:$0xff]
        %v337 = vld [vmem:[%s1 + $0x70] sm:$0xff]
        %v338 = vld [vmem:[%s1 + $0x78] sm:$0xff]
        %v339 = vld [vmem:[%s2] sm:$0x1]
        %v356 = vlaneseq
        %v357 = vand.u32 %v356, 127
        %v358 = vlaneseq
        %v359 = vshrl.u32 %v358, 7
        %v360 = vsub.s32 %v357, %v359
        %v361 = vrot.slane %v277, %v360
        %v362 = vadd.s32 %v357, 4294967288
        %v363 = vlaneseq
        %v364 = vshrl.u32 %v363, 7
        %v365 = vsub.s32 %v362, %v364
        %v366 = vrot.slane %v280, %v365
        %vm367 = vcmask 130112
        %v368 = vsel %vm367, %v366, %v361
        %v369 = vadd.s32 %v357, 4294967280
        %v370 = vlaneseq
        %v371 = vshrl.u32 %v370, 7
        %v372 = vsub.s32 %v369, %v371
        %v373 = vrot.slane %v283, %v372
        %vm374 = vcmask 195712
        %v375 = vsel %vm374, %v373, %v368
        %v376 = vadd.s32 %v357, 4294967272
        %v377 = vlaneseq
        %v378 = vshrl.u32 %v377, 7
        %v379 = vsub.s32 %v376, %v378
        %v380 = vrot.slane %v286, %v379
        %vm381 = vcmask 261312
        %v382 = vsel %vm381, %v380, %v375
        %v383 = vadd.s32 %v357, 4294967264
        %v384 = vlaneseq
        %v385 = vshrl.u32 %v384, 7
        %v386 = vsub.s32 %v383, %v385
        %v387 = vrot.slane %v289, %v386
        %vm388 = vcmask 326912
        %v389 = vsel %vm388, %v387, %v382
        %v390 = vadd.s32 %v357, 4294967256
        %v391 = vlaneseq
        %v392 = vshrl.u32 %v391, 7
        %v393 = vsub.s32 %v390, %v392
        %v394 = vrot.slane %v292, %v393
        %vm395 = vcmask 392512
        %v396 = vsel %vm395, %v394, %v389
        %v397 = vadd.s32 %v357, 4294967248
        %v398 = vlaneseq
        %v399 = vshrl.u32 %v398, 7
        %v400 = vsub.s32 %v397, %v399
        %v401 = vrot.slane %v295, %v400
        %vm402 = vcmask 458112
        %v403 = vsel %vm402, %v401, %v396
        %v404 = vadd.s32 %v357, 4294967240
        %v405 = vlaneseq
        %v406 = vshrl.u32 %v405, 7
        %v407 = vsub.s32 %v404, %v406
        %v408 = vrot.slane %v298, %v407
        %vm409 = vcmask 523712
        %v410 = vsel %vm409, %v408, %v403
        %v411 = vadd.s32 %v357, 4294967232
        %v412 = vlaneseq
        %v413 = vshrl.u32 %v412, 7
        %v414 = vsub.s32 %v411, %v413
        %v415 = vrot.slane %v301, %v414
        %vm416 = vcmask 589312
        %v417 = vsel %vm416, %v415, %v410
        %v418 = vadd.s32 %v357, 4294967224
        %v419 = vlaneseq
        %v420 = vshrl.u32 %v419, 7
        %v421 = vsub.s32 %v418, %v420
        %v422 = vrot.slane %v304, %v421
        %vm423 = vcmask 654912
        %v424 = vsel %vm423, %v422, %v417
        %v425 = vadd.s32 %v357, 4294967216
        %v426 = vlaneseq
        %v427 = vshrl.u32 %v426, 7
        %v428 = vsub.s32 %v425, %v427
        %v429 = vrot.slane %v307, %v428
        %vm430 = vcmask 720512
        %v431 = vsel %vm430, %v429, %v424
        %v432 = vadd.s32 %v357, 4294967208
        %v433 = vlaneseq
        %v434 = vshrl.u32 %v433, 7
        %v435 = vsub.s32 %v432, %v434
        %v436 = vrot.slane %v310, %v435
        %vm437 = vcmask 786112
        %v438 = vsel %vm437, %v436, %v431
        %v439 = vadd.s32 %v357, 4294967200
        %v440 = vlaneseq
        %v441 = vshrl.u32 %v440, 7
        %v442 = vsub.s32 %v439, %v441
        %v443 = vrot.slane %v313, %v442
        %vm444 = vcmask 851712
        %v445 = vsel %vm444, %v443, %v438
        %v446 = vadd.s32 %v357, 4294967192
        %v447 = vlaneseq
        %v448 = vshrl.u32 %v447, 7
        %v449 = vsub.s32 %v446, %v448
        %v450 = vrot.slane %v316, %v449
        %vm451 = vcmask 917312
        %v452 = vsel %vm451, %v450, %v445
        %v453 = vadd.s32 %v357, 4294967184
        %v454 = vlaneseq
        %v455 = vshrl.u32 %v454, 7
        %v456 = vsub.s32 %v453, %v455
        %v457 = vrot.slane %v319, %v456
        %vm458 = vcmask 982912
        %v459 = vsel %vm458, %v457, %v452
        %v460 = vadd.s32 %v357, 4294967176
        %v461 = vlaneseq
        %v462 = vshrl.u32 %v461, 7
        %v463 = vsub.s32 %v460, %v462
        %v464 = vrot.slane %v322, %v463
        %vm465 = vcmask 1048512
        %v466 = vsel %vm465, %v464, %v459
        %468 = vmatprep.subr.mxu0 0.0
        %469 = vmatpush1.msra.mxu0 %v323
        %470 = vmatprep.subr.mxu0 0.0
        %471 = vmatpush1.msra.mxu0 %v324
        %472 = vmatprep.subr.mxu0 0.0
        %473 = vmatpush1.msra.mxu0 %v325
        %474 = vmatprep.subr.mxu0 0.0
        %475 = vmatpush1.msra.mxu0 %v326
        %476 = vmatprep.subr.mxu0 0.0
        %477 = vmatpush1.msra.mxu0 %v327
        %478 = vmatprep.subr.mxu0 0.0
        %479 = vmatpush1.msra.mxu0 %v328
        %480 = vmatprep.subr.mxu0 0.0
        %481 = vmatpush1.msra.mxu0 %v329
        %482 = vmatprep.subr.mxu0 0.0
        %483 = vmatpush1.msra.mxu0 %v330
        %484 = vmatprep.subr.mxu0 0.0
        %485 = vmatpush1.msra.mxu0 %v331
        %486 = vmatprep.subr.mxu0 0.0
        %487 = vmatpush1.msra.mxu0 %v332
        %488 = vmatprep.subr.mxu0 0.0
        %489 = vmatpush1.msra.mxu0 %v333
        %490 = vmatprep.subr.mxu0 0.0
        %491 = vmatpush1.msra.mxu0 %v334
        %492 = vmatprep.subr.mxu0 0.0
        %493 = vmatpush1.msra.mxu0 %v335
        %494 = vmatprep.subr.mxu0 0.0
        %495 = vmatpush1.msra.mxu0 %v336
        %496 = vmatprep.subr.mxu0 0.0
        %497 = vmatpush1.msra.mxu0 %v337
        %498 = vmatprep.subr.mxu0 0.0
        %499 = vmatpush1.msra.mxu0 %v338
        %500 = vmatprep.subr.mxu0 0.0
        %501 = vmatpush1.msra.mxu0 0.0
        %502 = vmatprep.subr.mxu0 0.0
        %503 = vmatpush1.msra.mxu0 0.0
        %504 = vmatprep.subr.mxu0 0.0
        %505 = vmatpush1.msra.mxu0 0.0
        %506 = vmatprep.subr.mxu0 0.0
        %507 = vmatpush1.msra.mxu0 0.0
        %508 = vmatprep.subr.mxu0 0.0
        %509 = vmatpush1.msra.mxu0 0.0
        %510 = vmatprep.subr.mxu0 0.0
        %511 = vmatpush1.msra.mxu0 0.0
        %512 = vmatprep.subr.mxu0 0.0
        %513 = vmatpush1.msra.mxu0 0.0
        %514 = vmatprep.subr.mxu0 0.0
        %515 = vmatpush1.msra.mxu0 0.0
        %516 = vmatprep.subr.mxu0 0.0
        %517 = vmatpush1.msra.mxu0 0.0
        %518 = vmatprep.subr.mxu0 0.0
        %519 = vmatpush1.msra.mxu0 0.0
        %520 = vmatprep.subr.mxu0 0.0
        %521 = vmatpush1.msra.mxu0 0.0
        %522 = vmatprep.subr.mxu0 0.0
        %523 = vmatpush1.msra.mxu0 0.0
        %524 = vmatprep.subr.mxu0 0.0
        %525 = vmatpush1.msra.mxu0 0.0
        %526 = vmatprep.subr.mxu0 0.0
        %527 = vmatpush1.msra.mxu0 0.0
        %528 = vmatprep.subr.mxu0 0.0
        %529 = vmatpush1.msra.mxu0 0.0
        %530 = vmatprep.subr.mxu0 0.0
        %531 = vmatpush1.msra.mxu0 0.0
        %532 = vmatprep.mubr.f32.mxu0 0.0
        %533 = vmatmul.mubr.f32.gmra.mrb[0].mxu0 %v466
        %v534 = vpop.f32.mrb[0].mxu0
        %v535 = vadd.f32 %v339, %v534
        %v536 = vpop.f32.mrb[0].mxu0
        %537 = vdwg.mxu0
        %v538 = vmax.f32 %v535, 0.0
        %v539 = vld [vmem:[%s3] sm:$0xff]
        %v540 = vld [vmem:[%s4] sm:$0x1]
        %vm541 = vcmask 64512
        %v543 = vsel %vm541, %v538, 0
        %545 = vmatprep.subr.mxu0 0.0
        %546 = vmatpush1.msra.mxu0 %v539
        %547 = vmatprep.subr.mxu0 0.0
        %548 = vmatpush1.msra.mxu0 0.0
        %549 = vmatprep.subr.mxu0 0.0
        %550 = vmatpush1.msra.mxu0 0.0
        %551 = vmatprep.subr.mxu0 0.0
        %552 = vmatpush1.msra.mxu0 0.0
        %553 = vmatprep.subr.mxu0 0.0
        %554 = vmatpush1.msra.mxu0 0.0
        %555 = vmatprep.subr.mxu0 0.0
        %556 = vmatpush1.msra.mxu0 0.0
        %557 = vmatprep.subr.mxu0 0.0
        %558 = vmatpush1.msra.mxu0 0.0
        %559 = vmatprep.subr.mxu0 0.0
        %560 = vmatpush1.msra.mxu0 0.0
        %561 = vmatprep.subr.mxu0 0.0
        %562 = vmatpush1.msra.mxu0 0.0
        %563 = vmatprep.subr.mxu0 0.0
        %564 = vmatpush1.msra.mxu0 0.0
        %565 = vmatprep.subr.mxu0 0.0
        %566 = vmatpush1.msra.mxu0 0.0
        %567 = vmatprep.subr.mxu0 0.0
        %568 = vmatpush1.msra.mxu0 0.0
        %569 = vmatprep.subr.mxu0 0.0
        %570 = vmatpush1.msra.mxu0 0.0
        %571 = vmatprep.subr.mxu0 0.0
        %572 = vmatpush1.msra.mxu0 0.0
        %573 = vmatprep.subr.mxu0 0.0
        %574 = vmatpush1.msra.mxu0 0.0
        %575 = vmatprep.subr.mxu0 0.0
        %576 = vmatpush1.msra.mxu0 0.0
        %577 = vmatprep.subr.mxu0 0.0
        %578 = vmatpush1.msra.mxu0 0.0
        %579 = vmatprep.subr.mxu0 0.0
        %580 = vmatpush1.msra.mxu0 0.0
        %581 = vmatprep.subr.mxu0 0.0
        %582 = vmatpush1.msra.mxu0 0.0
        %583 = vmatprep.subr.mxu0 0.0
        %584 = vmatpush1.msra.mxu0 0.0
        %585 = vmatprep.subr.mxu0 0.0
        %586 = vmatpush1.msra.mxu0 0.0
        %587 = vmatprep.subr.mxu0 0.0
        %588 = vmatpush1.msra.mxu0 0.0
        %589 = vmatprep.subr.mxu0 0.0
        %590 = vmatpush1.msra.mxu0 0.0
        %591 = vmatprep.subr.mxu0 0.0
        %592 = vmatpush1.msra.mxu0 0.0
        %593 = vmatprep.subr.mxu0 0.0
        %594 = vmatpush1.msra.mxu0 0.0
        %595 = vmatprep.subr.mxu0 0.0
        %596 = vmatpush1.msra.mxu0 0.0
        %597 = vmatprep.subr.mxu0 0.0
        %598 = vmatpush1.msra.mxu0 0.0
        %599 = vmatprep.subr.mxu0 0.0
        %600 = vmatpush1.msra.mxu0 0.0
        %601 = vmatprep.subr.mxu0 0.0
        %602 = vmatpush1.msra.mxu0 0.0
        %603 = vmatprep.subr.mxu0 0.0
        %604 = vmatpush1.msra.mxu0 0.0
        %605 = vmatprep.subr.mxu0 0.0
        %606 = vmatpush1.msra.mxu0 0.0
        %607 = vmatprep.subr.mxu0 0.0
        %608 = vmatpush1.msra.mxu0 0.0
        %609 = vmatprep.mubr.f32.mxu0 0.0
        %610 = vmatmul.mubr.f32.gmra.mrb[0].mxu0 %v543
        %v611 = vpop.f32.mrb[0].mxu0
        %v612 = vadd.f32 %v540, %v611
        %v613 = vpop.f32.mrb[0].mxu0
        %614 = vdwg.mxu0
        %v615 = vxor.u32 %v612, 2147483648
        %v616 = vmul.f32 %v615, 1.442695
        %v617 = vpow.pop %v616
        %v618 = vadd.f32 %v617, 1.0
        %v619 = vrcp.pop %v618
        %v620 = vmul.f32 1.0, %v619
        %v621 = vlaneseq
        %v622 = vshrl.u32 %v621, 7
        %v623 = vsub.s32 0, %v622
        %v624 = vrot.slane %v620, %v623
        %626 = vbcast.lane.b32.xlu0 %v624, 256
        %v627 = vpop.permute.xlu0 %626
        %s629 = sor.u32 256, 8
        %630 = vbcast.lane.b32.xlu0 %v624, %s629
        %v631 = vpop.permute.xlu0 %630
        %s633 = sor.u32 256, 16
        %634 = vbcast.lane.b32.xlu0 %v624, %s633
        %v635 = vpop.permute.xlu0 %634
        %s637 = sor.u32 256, 24
        %638 = vbcast.lane.b32.xlu0 %v624, %s637
        %v639 = vpop.permute.xlu0 %638
        %s641 = sor.u32 256, 32
        %642 = vbcast.lane.b32.xlu0 %v624, %s641
        %v643 = vpop.permute.xlu0 %642
        %s645 = sor.u32 256, 40
        %646 = vbcast.lane.b32.xlu0 %v624, %s645
        %v647 = vpop.permute.xlu0 %646
        %s649 = sor.u32 256, 48
        %650 = vbcast.lane.b32.xlu0 %v624, %s649
        %v651 = vpop.permute.xlu0 %650
        %s653 = sor.u32 256, 56
        %654 = vbcast.lane.b32.xlu0 %v624, %s653
        %v655 = vpop.permute.xlu0 %654
        %s657 = sor.u32 256, 64
        %658 = vbcast.lane.b32.xlu0 %v624, %s657
        %v659 = vpop.permute.xlu0 %658
        %s661 = sor.u32 256, 72
        %662 = vbcast.lane.b32.xlu0 %v624, %s661
        %v663 = vpop.permute.xlu0 %662
        %s665 = sor.u32 256, 80
        %666 = vbcast.lane.b32.xlu0 %v624, %s665
        %v667 = vpop.permute.xlu0 %666
        %s669 = sor.u32 256, 88
        %670 = vbcast.lane.b32.xlu0 %v624, %s669
        %v671 = vpop.permute.xlu0 %670
        %s673 = sor.u32 256, 96
        %674 = vbcast.lane.b32.xlu0 %v624, %s673
        %v675 = vpop.permute.xlu0 %674
        %s677 = sor.u32 256, 104
        %678 = vbcast.lane.b32.xlu0 %v624, %s677
        %v679 = vpop.permute.xlu0 %678
        %s681 = sor.u32 256, 112
        %682 = vbcast.lane.b32.xlu0 %v624, %s681
        %v683 = vpop.permute.xlu0 %682
        %s685 = sor.u32 256, 120
        %686 = vbcast.lane.b32.xlu0 %v624, %s685
        %v687 = vpop.permute.xlu0 %686
        %v688 = vmul.f32 %v243, %v627
        %v689 = vmul.f32 %v244, %v627
        %v690 = vmul.f32 %v245, %v631
        %v691 = vmul.f32 %v246, %v631
        %v692 = vmul.f32 %v247, %v635
        %v693 = vmul.f32 %v248, %v635
        %v694 = vmul.f32 %v249, %v639
        %v695 = vmul.f32 %v250, %v639
        %v696 = vmul.f32 %v251, %v643
        %v697 = vmul.f32 %v252, %v643
        %v698 = vmul.f32 %v253, %v647
        %v699 = vmul.f32 %v254, %v647
        %v700 = vmul.f32 %v255, %v651
        %v701 = vmul.f32 %v256, %v651
        %v702 = vmul.f32 %v257, %v655
        %v703 = vmul.f32 %v258, %v655
        %v704 = vmul.f32 %v259, %v659
        %v705 = vmul.f32 %v260, %v659
        %v706 = vmul.f32 %v261, %v663
        %v707 = vmul.f32 %v262, %v663
        %v708 = vmul.f32 %v263, %v667
        %v709 = vmul.f32 %v264, %v667
        %v710 = vmul.f32 %v265, %v671
        %v711 = vmul.f32 %v266, %v671
        %v712 = vmul.f32 %v267, %v675
        %v713 = vmul.f32 %v268, %v675
        %v714 = vmul.f32 %v269, %v679
        %v715 = vmul.f32 %v270, %v679
        %v716 = vmul.f32 %v271, %v683
        %v717 = vmul.f32 %v272, %v683
        %v718 = vmul.f32 %v273, %v687
        %v719 = vmul.f32 %v274, %v687
        %720 = vst [vmem:[%s242] sm:$0xff] %v688
        %721 = vst [vmem:[%s242 + $0x8] sm:$0xff] %v689
        %722 = vst [vmem:[%s242 + $0x10] sm:$0xff] %v690
        %723 = vst [vmem:[%s242 + $0x18] sm:$0xff] %v691
        %724 = vst [vmem:[%s242 + $0x20] sm:$0xff] %v692
        %725 = vst [vmem:[%s242 + $0x28] sm:$0xff] %v693
        %726 = vst [vmem:[%s242 + $0x30] sm:$0xff] %v694
        %727 = vst [vmem:[%s242 + $0x38] sm:$0xff] %v695
        %728 = vst [vmem:[%s242 + $0x40] sm:$0xff] %v696
        %729 = vst [vmem:[%s242 + $0x48] sm:$0xff] %v697
        %730 = vst [vmem:[%s242 + $0x50] sm:$0xff] %v698
        %731 = vst [vmem:[%s242 + $0x58] sm:$0xff] %v699
        %732 = vst [vmem:[%s242 + $0x60] sm:$0xff] %v700
        %733 = vst [vmem:[%s242 + $0x68] sm:$0xff] %v701
        %734 = vst [vmem:[%s242 + $0x70] sm:$0xff] %v702
        %735 = vst [vmem:[%s242 + $0x78] sm:$0xff] %v703
        %736 = vst [vmem:[%s242 + $0x80] sm:$0xff] %v704
        %737 = vst [vmem:[%s242 + $0x88] sm:$0xff] %v705
        %738 = vst [vmem:[%s242 + $0x90] sm:$0xff] %v706
        %739 = vst [vmem:[%s242 + $0x98] sm:$0xff] %v707
        %740 = vst [vmem:[%s242 + $0xa0] sm:$0xff] %v708
        %741 = vst [vmem:[%s242 + $0xa8] sm:$0xff] %v709
        %742 = vst [vmem:[%s242 + $0xb0] sm:$0xff] %v710
        %743 = vst [vmem:[%s242 + $0xb8] sm:$0xff] %v711
        %744 = vst [vmem:[%s242 + $0xc0] sm:$0xff] %v712
        %745 = vst [vmem:[%s242 + $0xc8] sm:$0xff] %v713
        %746 = vst [vmem:[%s242 + $0xd0] sm:$0xff] %v714
        %747 = vst [vmem:[%s242 + $0xd8] sm:$0xff] %v715
        %748 = vst [vmem:[%s242 + $0xe0] sm:$0xff] %v716
        %749 = vst [vmem:[%s242 + $0xe8] sm:$0xff] %v717
        %750 = vst [vmem:[%s242 + $0xf0] sm:$0xff] %v718
        %751 = vst [vmem:[%s242 + $0xf8] sm:$0xff] %v719
        %s752 = sand.u32 %s140, 1
        %s753 = scalar_lea.sflag [#allocation4], %s752
        %s754 = sand.u32 %s140, 1
        %s755 = smul.addr %s754, 256
        %s756 = scalar_lea.vmem [#allocation5], %s755
        // Predicated region
        $region45: #{tpu_custom_call.1} parent=39 // pred_check
          %p757 = pneg %p150
        $region46: #{tpu_custom_call.1} parent=39 // pred_check_branch
          %759 = sbr.rel (%p757) target = $region48
        $region47: #{tpu_custom_call.1} parent=39 // pred_region
          %s761 = ssub.s32 4096, 4096
          %762 = vsyncadd %s753, %s761
          %s763 = smul.addr %s22, 32
          %s764 = smul.addr %s763, 128
          %s765 = scalar_lea.hbm %s5, %s764
          %s766 = sshll.u32 %s756, 4
          %s767 = int_to_ptr.vmem [resolvable:$true] %s766
          %772 = dma.vmem_to_hbm [thread:$0]  %s767, 4096, %s765, %s753, 256, 256, 16
        $region48: #{tpu_custom_call.1} parent=39 // pred_fallthru
          _
      $region40: #{tpu_custom_call.1} parent=5 // pred_fallthru
        _
      %p773 = scmp.le.s32.totalorder 2, %s17
      // Predicated region
      $region49: #{tpu_custom_call.1} parent=5 // pred_check
        %p774 = pneg %p773
      $region50: #{tpu_custom_call.1} parent=5 // pred_check_branch
        %776 = sbr.rel (%p774) target = $region52
      $region51: #{tpu_custom_call.1} parent=5 // pred_region
        %s777 = ssub.s32 %s17, 2
        // Predicated region
        $region53: #{tpu_custom_call.1} parent=51 // pred_check
          %p778 = pneg %p156
        $region54: #{tpu_custom_call.1} parent=51 // pred_check_branch
          %780 = sbr.rel (%p778) target = $region56
        $region55: #{tpu_custom_call.1} parent=51 // pred_region
          %s781 = sand.u32 %s141, 1
          %s782 = scalar_lea.sflag [#allocation4], %s781
          %s783 = sand.u32 %s141, 1
          %s784 = smul.addr %s783, 256
          %s785 = scalar_lea.vmem [#allocation5], %s784
          %786 = dma.done %s782, 4096
        $region56: #{tpu_custom_call.1} parent=51 // pred_fallthru
          _
      $region52: #{tpu_custom_call.1} parent=5 // pred_fallthru
        _
    $region6: #{tpu_custom_call.1} parent=1 // loop_footer
      %s21 = sadd.s32 1, %s17
    $region7: #{tpu_custom_call.1} parent=1 // loop_footer_branch
      %16 = sbr.rel target = $region3
    $region8: #{tpu_custom_call.1} parent=1 // loop_exit
      _
    %787 = vsyncpa [#allocation3], 1
    %s788 = scalar_lea.sflag [#allocation3], 1
    %789 = vsyncpa %s788, 1
    %790 = vsyncpa [#allocation4], 1
    %s791 = scalar_lea.sflag [#allocation4], 1
    %792 = vsyncpa %s791, 1

</llo_original>
